<compile_context>
chip_gen: v7x
topology: tpu7x:2x2x1
jax: 0.10.0
libtpu: 0.0.40
codegen_flags: <defaults>
</compile_context>

<pallas_src>
import functools

import jax
import jax.numpy as jnp
from jax import lax
from jax.experimental import pallas as pl
from jax.experimental.pallas import tpu as pltpu


# ---------------------------------------------------------------------------
# Phase 1: input projection hoisted out of the recurrence.
# ---------------------------------------------------------------------------
def _in_proj_kernel(x_ref, w_ref, b_ref, o_ref):
    o_ref[...] = (jnp.dot(x_ref[...], w_ref[...],
                          preferred_element_type=jnp.float32)
                  + b_ref[...]).astype(o_ref.dtype)


# ---------------------------------------------------------------------------
# Phase 2: sequential LSTM recurrence.  No grid; fori_loop over time in VMEM.
# ---------------------------------------------------------------------------
def _recurrent_kernel(xw_ref, h0_ref, c0_ref, whh_ref,
                      hall_ref, hT_ref, cT_ref, *, unroll):
    T = xw_ref.shape[0]
    H = whh_ref.shape[0]

    def step(t, carry):
        h, c = carry
        # gates = xW_t + h @ W_hh^T   (the only per-step matmul)
        gates = xw_ref[t] + jnp.dot(h, whh_ref[...],
                                    preferred_element_type=jnp.float32)
        i_g = jax.nn.sigmoid(gates[:, 0 * H:1 * H])
        f_g = jax.nn.sigmoid(gates[:, 1 * H:2 * H])
        g_g = jnp.tanh(gates[:, 2 * H:3 * H])
        o_g = jax.nn.sigmoid(gates[:, 3 * H:4 * H])
        c_new = f_g * c + i_g * g_g
        h_new = o_g * jnp.tanh(c_new)
        hall_ref[t] = h_new.astype(hall_ref.dtype)   # store into VMEM h-buffer
        return h_new, c_new

    h0 = h0_ref[...].astype(jnp.float32)
    c0 = c0_ref[...].astype(jnp.float32)
    h, c = lax.fori_loop(0, T, step, (h0, c0), unroll=unroll)

    hT_ref[...] = h.astype(hT_ref.dtype)
    cT_ref[...] = c.astype(cT_ref.dtype)


# ---------------------------------------------------------------------------
# Phase 3: deferred output Linear + residual + ReLU.
# ---------------------------------------------------------------------------
def _out_proj_kernel(x_ref, h_ref, w_ref, b_ref, o_ref):
    lin = jnp.dot(h_ref[...], w_ref[...],
                  preferred_element_type=jnp.float32) + b_ref[...]
    o_ref[...] = jnp.maximum(x_ref[...].astype(jnp.float32) + lin,
                             0.0).astype(o_ref.dtype)


def res_lstm_block(x, states, params):
    """x: (T, B, H) f32. states: (h0, c0) each (1, B, H). Returns (out, (hT, cT))."""
    T, B, H = x.shape
    h0, c0 = states
    w_ih, w_hh, b_ih, b_hh, w_lin, b_lin = params

    # Host-side weight prep: pre-transpose for row-major matmuls, fold biases.
    wih_t = w_ih.T                           # (H, 4H)
    whh_t = w_hh.T                           # (H, 4H)
    b = (b_ih + b_hh).reshape(1, 4 * H)      # (1, 4H)
    wl_t = w_lin.T                           # (H, H)
    bl = b_lin.reshape(1, H)                 # (1, H)
    # NOTE: on v6e/v7x, casting wih_t/whh_t/wl_t (and the h carry) to bfloat16
    # roughly doubles MXU throughput and halves resident weight VMEM; kept f32
    # here so the strict 1e-5 check against the f32 reference holds.

    M = T * B
    x2 = x.reshape(M, H)                     # host reshape, free

    # Row tiling for the two one-shot (non-recurrent) matmuls.
    tm = M if M <= 512 else 512
    grid_m = pl.cdiv(M, tm)
    par = pltpu.CompilerParams(dimension_semantics=("parallel",))

    # ---- Phase 1: xW = x2 @ W_ih^T + b, one big matmul. ----
    xw2 = pl.pallas_call(
        _in_proj_kernel,
        out_shape=jax.ShapeDtypeStruct((M, 4 * H), jnp.float32),
        grid=(grid_m,),
        in_specs=[
            pl.BlockSpec((tm, H), lambda i: (i, 0)),
            pl.BlockSpec((H, 4 * H), lambda i: (0, 0)),
            pl.BlockSpec((1, 4 * H), lambda i: (0, 0)),
        ],
        out_specs=pl.BlockSpec((tm, 4 * H), lambda i: (i, 0)),
        compiler_params=par,
    )(x2, wih_t, b)
    xw = xw2.reshape(T, B, 4 * H)

    # ---- Phase 2: recurrence (single kernel invocation, whole arrays in VMEM). ----
    vmem_est = 4 * (T * B * 4 * H + T * B * H + H * 4 * H + 4 * B * H)
    rec_kwargs = {}
    if vmem_est > 12 * 2**20:                # raise scoped VMEM only when needed
        rec_kwargs["vmem_limit_bytes"] = min(vmem_est * 3 // 2 + (1 << 20),
                                             60 * 2**20)
    vmem_spec = pl.BlockSpec(memory_space=pltpu.MemorySpace.VMEM)
    h_all, hT, cT = pl.pallas_call(
        functools.partial(_recurrent_kernel, unroll=(T <= 16)),
        out_shape=(
            jax.ShapeDtypeStruct((T, B, H), jnp.float32),   # all hidden states
            jax.ShapeDtypeStruct((B, H), x.dtype),          # h_T
            jax.ShapeDtypeStruct((B, H), x.dtype),          # c_T
        ),
        in_specs=[vmem_spec] * 4,
        out_specs=(vmem_spec,) * 3,
        compiler_params=pltpu.CompilerParams(**rec_kwargs),
    )(xw, h0.reshape(B, H), c0.reshape(B, H), whh_t)

    # ---- Phase 3: out = relu(x + H_all @ W_lin^T + b_lin), one big matmul. ----
    out2 = pl.pallas_call(
        _out_proj_kernel,
        out_shape=jax.ShapeDtypeStruct((M, H), x.dtype),
        grid=(grid_m,),
        in_specs=[
            pl.BlockSpec((tm, H), lambda i: (i, 0)),
            pl.BlockSpec((tm, H), lambda i: (i, 0)),
            pl.BlockSpec((H, H), lambda i: (0, 0)),
            pl.BlockSpec((1, H), lambda i: (0, 0)),
        ],
        out_specs=pl.BlockSpec((tm, H), lambda i: (i, 0)),
        compiler_params=par,
    )(x2, h_all.reshape(M, H), wl_t, bl)

    out = out2.reshape(T, B, H)
    return out, (hT.reshape(1, B, H), cT.reshape(1, B, H))


def _reference(x, states, params):
    """Pure-JAX reference mirroring PyTorch nn.LSTM + Linear + residual ReLU."""
    T, B, H = x.shape
    h, c = states[0][0], states[1][0]
    w_ih, w_hh, b_ih, b_hh, w_lin, b_lin = params
    outs = []
    for t in range(T):
        gates = x[t] @ w_ih.T + b_ih + h @ w_hh.T + b_hh
        i = jax.nn.sigmoid(gates[:, 0 * H:1 * H])
        f = jax.nn.sigmoid(gates[:, 1 * H:2 * H])
        g = jnp.tanh(gates[:, 2 * H:3 * H])
        o = jax.nn.sigmoid(gates[:, 3 * H:4 * H])
        c = f * c + i * g
        h = o * jnp.tanh(c)
        lin = h @ w_lin.T + b_lin
        outs.append(jnp.maximum(x[t] + lin, 0.0))
    return jnp.stack(outs), (h[None], c[None])


if __name__ == "__main__":
    T, B, H = 8, 4, 32
    key = jax.random.PRNGKey(0)
    ks = jax.random.split(key, 9)
    s = 1.0 / jnp.sqrt(H)

    # Deterministic PyTorch-style uniform(-1/sqrt(H), 1/sqrt(H)) init.
    w_ih = jax.random.uniform(ks[0], (4 * H, H), jnp.float32, -s, s)
    w_hh = jax.random.uniform(ks[1], (4 * H, H), jnp.float32, -s, s)
    b_ih = jax.random.uniform(ks[2], (4 * H,), jnp.float32, -s, s)
    b_hh = jax.random.uniform(ks[3], (4 * H,), jnp.float32, -s, s)
    w_lin = jax.random.uniform(ks[4], (H, H), jnp.float32, -s, s)
    b_lin = jax.random.uniform(ks[5], (H,), jnp.float32, -s, s)
    params = (w_ih, w_hh, b_ih, b_hh, w_lin, b_lin)

    x = jax.random.normal(ks[6], (T, B, H), jnp.float32)
    h0 = jax.random.normal(ks[7], (1, B, H), jnp.float32)
    c0 = jax.random.normal(ks[8], (1, B, H), jnp.float32)

    out, (hT, cT) = res_lstm_block(x, (h0, c0), params)
    jax.block_until_ready((out, hT, cT))

    ref_out, (ref_h, ref_c) = _reference(x, (h0, c0), params)
    assert jnp.allclose(out, ref_out, atol=1e-5, rtol=1e-5)
    assert jnp.allclose(hT, ref_h, atol=1e-5, rtol=1e-5)
    assert jnp.allclose(cT, ref_c, atol=1e-5, rtol=1e-5)

    print("KERNEL_OK")
</pallas_src>

<mosaic_0001>
module attributes {stable_mosaic.version = 11 : i64} {
  func.func @_in_proj_kernel(%arg0: i32, %arg1: memref<32x32xf32, #tpu.memory_space<vmem>>, %arg2: memref<32x128xf32, #tpu.memory_space<vmem>>, %arg3: memref<1x128xf32, #tpu.memory_space<vmem>>, %arg4: memref<32x128xf32, #tpu.memory_space<vmem>>) attributes {dimension_semantics = [#tpu.dimension_semantics<parallel>], iteration_bounds = array<i64: 1>, scalar_prefetch = 0 : i64, scratch_operands = 0 : i64, tpu.core_type = #tpu.core_type<tc>, window_params = [{transform_indices = @transform_0, window_bounds = array<i64: 32, 32>}, {pipeline_mode = #tpu.pipeline_mode<synchronous>, transform_indices = @transform_1, window_bounds = array<i64: 32, 128>}, {pipeline_mode = #tpu.pipeline_mode<synchronous>, transform_indices = @transform_2, window_bounds = array<i64: 1, 128>}, {transform_indices = @transform_3, window_bounds = array<i64: 32, 128>}]} {
    %c0 = arith.constant 0 : index
    %c0_0 = arith.constant 0 : index
    %0 = vector.load %arg1[%c0, %c0_0] : memref<32x32xf32, #tpu.memory_space<vmem>>, vector<32x32xf32>
    %c0_1 = arith.constant 0 : index
    %c0_2 = arith.constant 0 : index
    %1 = vector.load %arg2[%c0_1, %c0_2] : memref<32x128xf32, #tpu.memory_space<vmem>>, vector<32x128xf32>
    %cst = arith.constant dense<0.000000e+00> : vector<32x128xf32>
    %2 = tpu.matmul %0, %1, %cst {dimension_numbers = #tpu.dot_dimension_numbers<[1], [0], [0], [1], [0, 0, 1, 1], [], []>} : vector<32x32xf32>, vector<32x128xf32>, vector<32x128xf32> -> vector<32x128xf32>
    %c0_3 = arith.constant 0 : index
    %c0_4 = arith.constant 0 : index
    %3 = vector.load %arg3[%c0_3, %c0_4] : memref<1x128xf32, #tpu.memory_space<vmem>>, vector<1x128xf32>
    %4 = vector.broadcast %3 : vector<1x128xf32> to vector<32x128xf32>
    %5 = arith.addf %2, %4 : vector<32x128xf32>
    %c0_5 = arith.constant 0 : index
    %c0_6 = arith.constant 0 : index
    %6 = vector.load %arg4[%c0_5, %c0_6] : memref<32x128xf32, #tpu.memory_space<vmem>>, vector<32x128xf32>
    tpu.vector_store %arg4[%c0_5, %c0_6], %5 {strides = array<i32>} : memref<32x128xf32, #tpu.memory_space<vmem>>, vector<32x128xf32>,
    return
  }
  func.func @transform_0(%arg0: i32) -> (i32, i32) {
    %c0_i32 = arith.constant 0 : i32
    %c0_i32_0 = arith.constant 0 : i32
    return %arg0, %c0_i32 : i32, i32
  }
  func.func @transform_1(%arg0: i32) -> (i32, i32) {
    %c0_i32 = arith.constant 0 : i32
    %c0_i32_0 = arith.constant 0 : i32
    %c0_i32_1 = arith.constant 0 : i32
    return %c0_i32, %c0_i32_0 : i32, i32
  }
  func.func @transform_2(%arg0: i32) -> (i32, i32) {
    %c0_i32 = arith.constant 0 : i32
    %c0_i32_0 = arith.constant 0 : i32
    %c0_i32_1 = arith.constant 0 : i32
    return %c0_i32, %c0_i32_0 : i32, i32
  }
  func.func @transform_3(%arg0: i32) -> (i32, i32) {
    %c0_i32 = arith.constant 0 : i32
    %c0_i32_0 = arith.constant 0 : i32
    return %arg0, %c0_i32 : i32, i32
  }
}

</mosaic_0001>

<llo_original>
// kernel: tpu_custom_call.1
$region0: #{tpu_custom_call.1}
  #allocation0 [shape = 'u32[]', space=smem, size = 0x4, offset = 0x4, fixed_abs, tag = 'smem constant byte address 0x4 - core index']
  #allocation1 [shape = 'u32[144,128]{1,0:T(1,128)}', space=vmem, size = 0x12000, scoped, tag = 'internal scratch']
  %s0 = inlined_call_operand.hbm [shape: f32[32,32], index: 0, kind: input, shape index: {}]
  %s1 = inlined_call_operand.hbm [shape: f32[32,128], index: 1, kind: input, shape index: {}]
  %s2 = inlined_call_operand.vmem [shape: f32[1,128], index: 2, kind: input, shape index: {}]
  %s3 = inlined_call_operand.hbm [shape: f32[32,128], index: 3, kind: output, shape index: {}]
  %s4 = sld [smem:[#allocation0]]
  $region30: #{tpu_custom_call.1} parent=0
    _
  %s6 = ssub.s32 1, %s4
  %s7 = scalar_select 0, %s6, %s4
  $region1: #{tpu_custom_call.1} parent=0
    #allocation2 [shape = 'u8[16384]{0}', space=vmem, size = 0x4000, scoped, tag = 'input window, operand 0, single buffered']
    #allocation3 [shape = 's32[1]{0}', space=sflag, size = 0x4, scoped, tag = 'scoped memory for tpu_custom_call.1']
    #allocation4 [shape = 's32[1]{0}', space=sflag, size = 0x4, scoped, tag = 'scoped memory for tpu_custom_call.1']
    #allocation5 [shape = 'u8[16384]{0}', space=vmem, size = 0x4000, scoped, tag = 'input window, operand 1, single buffered']
    #allocation6 [shape = 's32[1]{0}', space=sflag, size = 0x4, scoped, tag = 'scoped memory for tpu_custom_call.1']
    #allocation7 [shape = 'u8[16384]{0}', space=vmem, size = 0x4000, scoped, tag = 'output window, operand 0, single buffered']
    %8 = vsyncpa [#allocation3], 0
    %9 = vsyncpa [#allocation6], 0
    %10 = vsyncpa [#allocation4], 0
    // Predicated region
    $region2: #{tpu_custom_call.1} parent=1 // pred_check
      _
    $region3: #{tpu_custom_call.1} parent=1 // pred_check_branch
      %12 = sbr.rel (0) target = $region5
    $region4: #{tpu_custom_call.1} parent=1 // pred_region
      %s14 = ssub.s32 512, 512
      %15 = vsyncadd [#allocation3], %s14
      %s16 = sshll.u32 [#allocation2], 4
      %s17 = int_to_ptr.vmem [resolvable:$true] %s16
      %22 = dma.hbm_to_vmem [thread:$0]  %s0, 512, %s17, [#allocation3], 128, 128, 8
    $region5: #{tpu_custom_call.1} parent=1 // pred_fallthru
      _
    // Predicated region
    $region6: #{tpu_custom_call.1} parent=1 // pred_check
      _
    $region7: #{tpu_custom_call.1} parent=1 // pred_check_branch
      %24 = sbr.rel (0) target = $region9
    $region8: #{tpu_custom_call.1} parent=1 // pred_region
      %s26 = ssub.s32 512, 512
      %27 = vsyncadd [#allocation6], %s26
      %s28 = sshll.u32 [#allocation5], 4
      %s29 = int_to_ptr.vmem [resolvable:$true] %s28
      %34 = dma.hbm_to_vmem [thread:$0]  %s1, 512, %s29, [#allocation6], 128, 128, 8
    $region9: #{tpu_custom_call.1} parent=1 // pred_fallthru
      _
    // Predicated region
    $region10: #{tpu_custom_call.1} parent=1 // pred_check
      _
    $region11: #{tpu_custom_call.1} parent=1 // pred_check_branch
      %36 = sbr.rel (0) target = $region13
    $region12: #{tpu_custom_call.1} parent=1 // pred_region
      _
    $region13: #{tpu_custom_call.1} parent=1 // pred_fallthru
      _
    // Predicated region
    $region14: #{tpu_custom_call.1} parent=1 // pred_check
      _
    $region15: #{tpu_custom_call.1} parent=1 // pred_check_branch
      %38 = sbr.rel (0) target = $region17
    $region16: #{tpu_custom_call.1} parent=1 // pred_region
      %39 = dma.done [#allocation3], 512
    $region17: #{tpu_custom_call.1} parent=1 // pred_fallthru
      _
    // Predicated region
    $region18: #{tpu_custom_call.1} parent=1 // pred_check
      _
    $region19: #{tpu_custom_call.1} parent=1 // pred_check_branch
      %41 = sbr.rel (0) target = $region21
    $region20: #{tpu_custom_call.1} parent=1 // pred_region
      %42 = dma.done [#allocation6], 512
    $region21: #{tpu_custom_call.1} parent=1 // pred_fallthru
      _
    %v43 = vld [vmem:[#allocation2] sm:$0xff]
    %v44 = vld [vmem:[#allocation2 + $0x8] sm:$0xff]
    %v45 = vld [vmem:[#allocation2 + $0x10] sm:$0xff]
    %v46 = vld [vmem:[#allocation2 + $0x18] sm:$0xff]
    %v47 = vld [vmem:[#allocation5] sm:$0xff]
    %v48 = vld [vmem:[#allocation5 + $0x8] sm:$0xff]
    %v49 = vld [vmem:[#allocation5 + $0x10] sm:$0xff]
    %v50 = vld [vmem:[#allocation5 + $0x18] sm:$0xff]
    %v51 = vld [vmem:[%s2] sm:$0x1]
    %v53 = vlaneseq
    %v54 = vshrl.u32 %v53, 7
    %v55 = vsub.s32 0, %v54
    %v56 = vrot.slane %v51, %v55
    %vm58 = vcmask 261120
    %v60 = vsel %vm58, %v43, 0
    %v63 = vsel %vm58, %v44, 0
    %v66 = vsel %vm58, %v45, 0
    %v69 = vsel %vm58, %v46, 0
    %71 = vmatprep.subr.mxu0 0.0
    %72 = vmatpush1.msra.mxu0 %v47
    %73 = vmatprep.subr.mxu0 0.0
    %74 = vmatpush1.msra.mxu0 %v48
    %75 = vmatprep.subr.mxu0 0.0
    %76 = vmatpush1.msra.mxu0 %v49
    %77 = vmatprep.subr.mxu0 0.0
    %78 = vmatpush1.msra.mxu0 %v50
    %79 = vmatprep.subr.mxu0 0.0
    %80 = vmatpush1.msra.mxu0 0.0
    %81 = vmatprep.subr.mxu0 0.0
    %82 = vmatpush1.msra.mxu0 0.0
    %83 = vmatprep.subr.mxu0 0.0
    %84 = vmatpush1.msra.mxu0 0.0
    %85 = vmatprep.subr.mxu0 0.0
    %86 = vmatpush1.msra.mxu0 0.0
    %87 = vmatprep.subr.mxu0 0.0
    %88 = vmatpush1.msra.mxu0 0.0
    %89 = vmatprep.subr.mxu0 0.0
    %90 = vmatpush1.msra.mxu0 0.0
    %91 = vmatprep.subr.mxu0 0.0
    %92 = vmatpush1.msra.mxu0 0.0
    %93 = vmatprep.subr.mxu0 0.0
    %94 = vmatpush1.msra.mxu0 0.0
    %95 = vmatprep.subr.mxu0 0.0
    %96 = vmatpush1.msra.mxu0 0.0
    %97 = vmatprep.subr.mxu0 0.0
    %98 = vmatpush1.msra.mxu0 0.0
    %99 = vmatprep.subr.mxu0 0.0
    %100 = vmatpush1.msra.mxu0 0.0
    %101 = vmatprep.subr.mxu0 0.0
    %102 = vmatpush1.msra.mxu0 0.0
    %103 = vmatprep.subr.mxu0 0.0
    %104 = vmatpush1.msra.mxu0 0.0
    %105 = vmatprep.subr.mxu0 0.0
    %106 = vmatpush1.msra.mxu0 0.0
    %107 = vmatprep.subr.mxu0 0.0
    %108 = vmatpush1.msra.mxu0 0.0
    %109 = vmatprep.subr.mxu0 0.0
    %110 = vmatpush1.msra.mxu0 0.0
    %111 = vmatprep.subr.mxu0 0.0
    %112 = vmatpush1.msra.mxu0 0.0
    %113 = vmatprep.subr.mxu0 0.0
    %114 = vmatpush1.msra.mxu0 0.0
    %115 = vmatprep.subr.mxu0 0.0
    %116 = vmatpush1.msra.mxu0 0.0
    %117 = vmatprep.subr.mxu0 0.0
    %118 = vmatpush1.msra.mxu0 0.0
    %119 = vmatprep.subr.mxu0 0.0
    %120 = vmatpush1.msra.mxu0 0.0
    %121 = vmatprep.subr.mxu0 0.0
    %122 = vmatpush1.msra.mxu0 0.0
    %123 = vmatprep.subr.mxu0 0.0
    %124 = vmatpush1.msra.mxu0 0.0
    %125 = vmatprep.subr.mxu0 0.0
    %126 = vmatpush1.msra.mxu0 0.0
    %127 = vmatprep.subr.mxu0 0.0
    %128 = vmatpush1.msra.mxu0 0.0
    %129 = vmatprep.subr.mxu0 0.0
    %130 = vmatpush1.msra.mxu0 0.0
    %131 = vmatprep.subr.mxu0 0.0
    %132 = vmatpush1.msra.mxu0 0.0
    %133 = vmatprep.subr.mxu0 0.0
    %134 = vmatpush1.msra.mxu0 0.0
    %135 = vmatprep.mubr.f32.mxu0 0.0
    %136 = vmatmul.mubr.f32.gmra.mrb[0].mxu0 %v60
    %v137 = vpop.f32.mrb[0].mxu0
    %v138 = vadd.f32 %v56, %v137
    %v139 = vpop.f32.mrb[0].mxu0
    %140 = vmatprep.mubr.f32.mxu0 0.0
    %141 = vmatmul.mubr.f32.gmra.mrb[0].mxu0 %v63
    %v142 = vpop.f32.mrb[0].mxu0
    %v143 = vadd.f32 %v56, %v142
    %v144 = vpop.f32.mrb[0].mxu0
    %145 = vmatprep.mubr.f32.mxu0 0.0
    %146 = vmatmul.mubr.f32.gmra.mrb[0].mxu0 %v66
    %v147 = vpop.f32.mrb[0].mxu0
    %v148 = vadd.f32 %v56, %v147
    %v149 = vpop.f32.mrb[0].mxu0
    %150 = vmatprep.mubr.f32.mxu0 0.0
    %151 = vmatmul.mubr.f32.gmra.mrb[0].mxu0 %v69
    %v152 = vpop.f32.mrb[0].mxu0
    %v153 = vadd.f32 %v56, %v152
    %v154 = vpop.f32.mrb[0].mxu0
    %155 = vdwg.mxu0
    %156 = vst [vmem:[#allocation7] sm:$0xff] %v138
    %157 = vst [vmem:[#allocation7 + $0x8] sm:$0xff] %v143
    %158 = vst [vmem:[#allocation7 + $0x10] sm:$0xff] %v148
    %159 = vst [vmem:[#allocation7 + $0x18] sm:$0xff] %v153
    // Predicated region
    $region22: #{tpu_custom_call.1} parent=1 // pred_check
      _
    $region23: #{tpu_custom_call.1} parent=1 // pred_check_branch
      %161 = sbr.rel (0) target = $region25
    $region24: #{tpu_custom_call.1} parent=1 // pred_region
      %s163 = ssub.s32 512, 512
      %164 = vsyncadd [#allocation4], %s163
      %s165 = sshll.u32 [#allocation7], 4
      %s166 = int_to_ptr.vmem [resolvable:$true] %s165
      %171 = dma.vmem_to_hbm [thread:$0]  %s166, 512, %s3, [#allocation4], 128, 128, 8
    $region25: #{tpu_custom_call.1} parent=1 // pred_fallthru
      _
    // Predicated region
    $region26: #{tpu_custom_call.1} parent=1 // pred_check
      _
    $region27: #{tpu_custom_call.1} parent=1 // pred_check_branch
      %173 = sbr.rel (0) target = $region29
    $region28: #{tpu_custom_call.1} parent=1 // pred_region
      %174 = dma.done [#allocation4], 512
    $region29: #{tpu_custom_call.1} parent=1 // pred_fallthru
      _
    %175 = vsyncpa [#allocation3], 1
    %176 = vsyncpa [#allocation6], 1
    %177 = vsyncpa [#allocation4], 1

</llo_original>
